<compile_context>
chip_gen: v7x
topology: tpu7x:2x2x1
jax: 0.10.0
libtpu: 0.0.40
codegen_flags: <defaults>
</compile_context>

<pallas_src>
import numpy as np
import jax
import jax.numpy as jnp
from jax import lax
from jax.experimental import pallas as pl
from jax.experimental.pallas import tpu as pltpu


def _choose_tile_n(c, itemsize):
    # Keep (2 double-buffered logits tiles) x (C x TILE_N x itemsize) well under
    # the scoped-VMEM limit, conservatively sized for v7x (64 MiB physical VMEM).
    budget = 8 * 1024 * 1024
    tn = budget // max(1, 2 * c * itemsize)
    tn = min(tn, 2048)
    tn = max(128, (tn // 128) * 128)
    return int(tn)


def _weighted_ce_pallas(logits, target, weights, *, tile_n=None):
    """Weighted mean cross-entropy (torch.nn.CrossEntropyLoss(weight=w) semantics).

    logits: (N, C) float; target: (N,) int; weights: (C,) float.
    Returns scalar f32: sum_i w[t_i]*(logsumexp(x_i) - x_i[t_i]) / sum_i w[t_i].
    """
    n, c = logits.shape
    itemsize = jnp.dtype(logits.dtype).itemsize

    # lane-dense layout: batch on the 128-lane axis, classes on sublanes
    x_cn = jnp.transpose(logits)                        # (C, N), native dtype
    tgt = target.astype(jnp.int32).reshape(1, n)        # (1, N)
    w_c1 = weights.astype(jnp.float32).reshape(c, 1)    # (C, 1)

    if tile_n is None:
        tile_n = _choose_tile_n(c, itemsize)
    tn = n if n <= tile_n else tile_n                   # full block OR mult. of 128
    grid = (pl.cdiv(n, tn),)

    def kernel(x_ref, t_ref, w_ref, out_ref, acc_ref):
        pid = pl.program_id(0)

        @pl.when(pid == 0)
        def _init():
            acc_ref[0] = jnp.float32(0.0)   # running numerator
            acc_ref[1] = jnp.float32(0.0)   # running denominator

        x = x_ref[...].astype(jnp.float32)              # (C, tn)  cast in-kernel
        t = t_ref[...]                                  # (1, tn)  int32
        w = w_ref[...]                                  # (C, 1)   f32

        # one-hot over the class (sublane) axis
        cls_ids = lax.broadcasted_iota(jnp.int32, (c, tn), 0)
        onehot = cls_ids == t                           # (C, tn) bool

        # numerically stable log-sum-exp over classes (per batch column)
        m = jnp.max(x, axis=0, keepdims=True)                               # (1, tn)
        lse = m + jnp.log(jnp.sum(jnp.exp(x - m), axis=0, keepdims=True))   # (1, tn)

        x_t = jnp.sum(jnp.where(onehot, x, 0.0), axis=0, keepdims=True)     # (1, tn)
        w_t = jnp.sum(jnp.where(onehot, w, 0.0), axis=0, keepdims=True)     # (1, tn)

        # mask out columns beyond the real batch (partial last tile)
        col = lax.broadcasted_iota(jnp.int32, (1, tn), 1) + pid * tn
        valid = col < n

        ce = lse - x_t
        acc_ref[0] += jnp.sum(jnp.where(valid, w_t * ce, 0.0))
        acc_ref[1] += jnp.sum(jnp.where(valid, w_t, 0.0))

        @pl.when(pid == pl.num_programs(0) - 1)
        def _finalize():
            out_ref[0, 0] = acc_ref[0] / acc_ref[1]

    out = pl.pallas_call(
        kernel,
        out_shape=jax.ShapeDtypeStruct((1, 1), jnp.float32),
        grid=grid,
        in_specs=[
            pl.BlockSpec((c, tn), lambda i: (0, i)),    # logits (C, N) tile
            pl.BlockSpec((1, tn), lambda i: (0, i)),    # targets (1, N) tile
            pl.BlockSpec((c, 1), lambda i: (0, 0)),     # class weights (resident)
        ],
        out_specs=pl.BlockSpec(memory_space=pltpu.MemorySpace.SMEM),
        scratch_shapes=[pltpu.SMEM((2,), jnp.float32)],
        compiler_params=pltpu.CompilerParams(
            dimension_semantics=("arbitrary",),         # reduction axis carries acc
            vmem_limit_bytes=32 * 1024 * 1024,
        ),
        cost_estimate=pl.CostEstimate(
            flops=int(6 * n * c),
            transcendentals=int(n * c + 2 * n),
            bytes_accessed=int(n * c * itemsize + n * 4 + c * 4),
        ),
    )(x_cn, tgt, w_c1)
    return out[0, 0]


class CBLossPallas:
    """JAX/Pallas port of the PyTorch CB_Loss module (forward pass)."""

    def __init__(self, sample_per_cls, no_of_cls, beta, loss="ce", gamma=2):
        self.sample_per_cls = np.asarray(sample_per_cls, dtype=np.float64)
        self.no_of_cls = no_of_cls
        self.beta = beta
        self.gamma = gamma
        self.loss = loss

    def _class_weights(self):
        effective_num = 1.0 - np.power(self.beta, self.sample_per_cls)
        weights = (1.0 - self.beta) / np.array(effective_num)
        weights = weights / np.sum(weights) * self.no_of_cls
        return jnp.asarray(weights, dtype=jnp.float32)

    def __call__(self, inputs, target):
        weights = self._class_weights()
        if self.loss == "ce":
            # nn.CrossEntropyLoss(weight=weights): weighted mean per-sample CE
            return _weighted_ce_pallas(inputs, target, weights)
        if self.loss == "fl":
            # FocalLoss(alpha=weights): unweighted *scalar* mean CE, then
            # F_loss = alpha * (1 - exp(-CE))**gamma * CE (per-class vector),
            # reduced with mean -- matches the original module's formula.
            ones = jnp.ones((inputs.shape[1],), dtype=jnp.float32)
            bce = _weighted_ce_pallas(inputs, target, ones)   # unweighted mean CE
            pt = jnp.exp(-bce)
            f_loss = weights * (1.0 - pt) ** self.gamma * bce
            return jnp.mean(f_loss)
        raise ValueError(f"unknown loss {self.loss!r}")


def _reference_weighted_ce(logits, target, weights):
    """Pure-JAX reference of torch.nn.CrossEntropyLoss(weight=w) (mean reduction)."""
    logp = jax.nn.log_softmax(logits.astype(jnp.float32), axis=-1)
    n = logits.shape[0]
    picked = logp[jnp.arange(n), target]
    w_t = weights[target]
    return -jnp.sum(w_t * picked) / jnp.sum(w_t)


if __name__ == "__main__":
    key = jax.random.PRNGKey(0)
    k1, k2, k3, k4 = jax.random.split(key, 4)

    # small demo shapes implied by the module: batch=8 samples, 4 classes
    N, C = 8, 4
    sample_per_cls = [30, 10, 50, 20]
    beta = 0.999

    logits = jax.random.normal(k1, (N, C), dtype=jnp.float32)
    target = jax.random.randint(k2, (N,), 0, C, dtype=jnp.int32)

    cb_loss = CBLossPallas(sample_per_cls, no_of_cls=C, beta=beta, loss="ce", gamma=2)
    loss_ce = cb_loss(logits, target)
    jax.block_until_ready(loss_ce)

    ref = _reference_weighted_ce(logits, target, cb_loss._class_weights())
    assert jnp.allclose(loss_ce, ref, rtol=1e-5, atol=1e-5), (loss_ce, ref)

    # exercise the tiled + masked-partial-tile path (N not a multiple of the tile)
    N2 = 260
    logits2 = jax.random.normal(k3, (N2, C), dtype=jnp.float32)
    target2 = jax.random.randint(k4, (N2,), 0, C, dtype=jnp.int32)
    w = cb_loss._class_weights()
    loss2 = _weighted_ce_pallas(logits2, target2, w, tile_n=128)
    jax.block_until_ready(loss2)
    ref2 = _reference_weighted_ce(logits2, target2, w)
    assert jnp.allclose(loss2, ref2, rtol=1e-5, atol=1e-5), (loss2, ref2)

    # also exercise the 'fl' branch once
    cb_loss_fl = CBLossPallas(sample_per_cls, no_of_cls=C, beta=beta, loss="fl", gamma=2)
    loss_fl = cb_loss_fl(logits, target)
    jax.block_until_ready(loss_fl)

    print("KERNEL_OK")
</pallas_src>

<mosaic_0001>
module attributes {stable_mosaic.version = 11 : i64} {
  func.func @kernel(%arg0: i32, %arg1: memref<4x8xf32, #tpu.memory_space<vmem>>, %arg2: memref<1x8xi32, #tpu.memory_space<vmem>>, %arg3: memref<4x1xf32, #tpu.memory_space<vmem>>, %arg4: memref<1x1xf32, #tpu.memory_space<smem>>, %arg5: memref<2xf32, #tpu.memory_space<smem>>) attributes {dimension_semantics = [#tpu.dimension_semantics<arbitrary>], iteration_bounds = array<i64: 1>, scalar_prefetch = 0 : i64, scratch_operands = 1 : i64, tpu.core_type = #tpu.core_type<tc>, window_params = [{transform_indices = @transform_0, window_bounds = array<i64: 4, 8>}, {transform_indices = @transform_1, window_bounds = array<i64: 1, 8>}, {pipeline_mode = #tpu.pipeline_mode<synchronous>, transform_indices = @transform_2, window_bounds = array<i64: 4, 1>}, {transform_indices = @transform_3, window_bounds = array<i64: 1, 1>}]} {
    %c0_i32 = arith.constant 0 : i32
    %0 = arith.cmpi eq, %arg0, %c0_i32 : i32
    %1 = arith.extui %0 : i1 to i32
    %c0_i32_0 = arith.constant 0 : i32
    %2 = arith.cmpi ne, %1, %c0_i32_0 : i32
    scf.if %2 {
      %cst_21 = arith.constant 0.000000e+00 : f32
      %c0_22 = arith.constant 0 : index
      %57 = memref.load %arg5[%c0_22] : memref<2xf32, #tpu.memory_space<smem>>
      memref.store %cst_21, %arg5[%c0_22] : memref<2xf32, #tpu.memory_space<smem>>
      %cst_23 = arith.constant 0.000000e+00 : f32
      %c1_24 = arith.constant 1 : index
      %58 = memref.load %arg5[%c1_24] : memref<2xf32, #tpu.memory_space<smem>>
      memref.store %cst_23, %arg5[%c1_24] : memref<2xf32, #tpu.memory_space<smem>>
    } else {
    }
    %c0 = arith.constant 0 : index
    %c0_1 = arith.constant 0 : index
    %3 = vector.load %arg1[%c0, %c0_1] : memref<4x8xf32, #tpu.memory_space<vmem>>, vector<4x8xf32>
    %c0_2 = arith.constant 0 : index
    %c0_3 = arith.constant 0 : index
    %4 = vector.load %arg2[%c0_2, %c0_3] : memref<1x8xi32, #tpu.memory_space<vmem>>, vector<1x8xi32>
    %c0_4 = arith.constant 0 : index
    %c0_5 = arith.constant 0 : index
    %5 = vector.load %arg3[%c0_4, %c0_5] : memref<4x1xf32, #tpu.memory_space<vmem>>, vector<4x1xf32>
    %6 = tpu.iota {dimensions = array<i32: 0>} : vector<4x8xi32>
    %7 = vector.broadcast %4 : vector<1x8xi32> to vector<4x8xi32>
    %8 = arith.cmpi eq, %6, %7 : vector<4x8xi32>
    %cst = arith.constant dense<0xFF800000> : vector<8xf32>
    %9 = vector.multi_reduction <maximumf>, %3, %cst [0] : vector<4x8xf32> to vector<8xf32>
    %10 = vector.shape_cast %9 : vector<8xf32> to vector<1x8xf32>
    %11 = vector.broadcast %10 : vector<1x8xf32> to vector<4x8xf32>
    %12 = arith.subf %3, %11 : vector<4x8xf32>
    %13 = math.exp %12 : vector<4x8xf32>
    %cst_6 = arith.constant dense<0.000000e+00> : vector<8xf32>
    %14 = vector.multi_reduction <add>, %13, %cst_6 [0] : vector<4x8xf32> to vector<8xf32>
    %15 = vector.shape_cast %14 : vector<8xf32> to vector<1x8xf32>
    %16 = math.log %15 : vector<1x8xf32>
    %17 = arith.addf %10, %16 : vector<1x8xf32>
    %cst_7 = arith.constant 0.000000e+00 : f32
    %18 = vector.broadcast %cst_7 : f32 to vector<4x8xf32>
    %19 = arith.select %8, %3, %18 : vector<4x8xi1>, vector<4x8xf32>
    %cst_8 = arith.constant dense<0.000000e+00> : vector<8xf32>
    %20 = vector.multi_reduction <add>, %19, %cst_8 [0] : vector<4x8xf32> to vector<8xf32>
    %21 = vector.shape_cast %20 : vector<8xf32> to vector<1x8xf32>
    %cst_9 = arith.constant 0.000000e+00 : f32
    %22 = vector.shape_cast %5 : vector<4x1xf32> to vector<4x1xf32>
    %23 = vector.broadcast %22 : vector<4x1xf32> to vector<4x8xf32>
    %24 = vector.broadcast %cst_9 : f32 to vector<4x8xf32>
    %25 = arith.select %8, %23, %24 : vector<4x8xi1>, vector<4x8xf32>
    %cst_10 = arith.constant dense<0.000000e+00> : vector<8xf32>
    %26 = vector.multi_reduction <add>, %25, %cst_10 [0] : vector<4x8xf32> to vector<8xf32>
    %27 = vector.shape_cast %26 : vector<8xf32> to vector<1x8xf32>
    %28 = tpu.iota {dimensions = array<i32: 1>} : vector<1x8xi32>
    %c8_i32 = arith.constant 8 : i32
    %29 = arith.muli %arg0, %c8_i32 : i32
    %30 = vector.broadcast %29 : i32 to vector<1x8xi32>
    %31 = arith.addi %28, %30 : vector<1x8xi32>
    %c8_i32_11 = arith.constant 8 : i32
    %32 = vector.broadcast %c8_i32_11 : i32 to vector<1x8xi32>
    %33 = arith.cmpi slt, %31, %32 : vector<1x8xi32>
    %34 = arith.subf %17, %21 : vector<1x8xf32>
    %c0_12 = arith.constant 0 : index
    %35 = memref.load %arg5[%c0_12] : memref<2xf32, #tpu.memory_space<smem>>
    %36 = arith.mulf %27, %34 : vector<1x8xf32>
    %cst_13 = arith.constant 0.000000e+00 : f32
    %37 = vector.broadcast %cst_13 : f32 to vector<1x8xf32>
    %38 = arith.select %33, %36, %37 : vector<1x8xi1>, vector<1x8xf32>
    %39 = vector.shape_cast %38 : vector<1x8xf32> to vector<1x1x8xf32>
    %cst_14 = arith.constant dense<0.000000e+00> : vector<1xf32>
    %40 = vector.multi_reduction <add>, %39, %cst_14 [1, 2] : vector<1x1x8xf32> to vector<1xf32>
    %41 = vector.shape_cast %40 : vector<1xf32> to vector<1x1x1xf32>
    %42 = vector.extract %41[0, 0, 0] : f32 from vector<1x1x1xf32>
    %43 = arith.addf %35, %42 : f32
    %c0_15 = arith.constant 0 : index
    %44 = memref.load %arg5[%c0_15] : memref<2xf32, #tpu.memory_space<smem>>
    memref.store %43, %arg5[%c0_15] : memref<2xf32, #tpu.memory_space<smem>>
    %c1 = arith.constant 1 : index
    %45 = memref.load %arg5[%c1] : memref<2xf32, #tpu.memory_space<smem>>
    %cst_16 = arith.constant 0.000000e+00 : f32
    %46 = vector.broadcast %cst_16 : f32 to vector<1x8xf32>
    %47 = arith.select %33, %27, %46 : vector<1x8xi1>, vector<1x8xf32>
    %48 = vector.shape_cast %47 : vector<1x8xf32> to vector<1x1x8xf32>
    %cst_17 = arith.constant dense<0.000000e+00> : vector<1xf32>
    %49 = vector.multi_reduction <add>, %48, %cst_17 [1, 2] : vector<1x1x8xf32> to vector<1xf32>
    %50 = vector.shape_cast %49 : vector<1xf32> to vector<1x1x1xf32>
    %51 = vector.extract %50[0, 0, 0] : f32 from vector<1x1x1xf32>
    %52 = arith.addf %45, %51 : f32
    %c1_18 = arith.constant 1 : index
    %53 = memref.load %arg5[%c1_18] : memref<2xf32, #tpu.memory_space<smem>>
    memref.store %52, %arg5[%c1_18] : memref<2xf32, #tpu.memory_space<smem>>
    %c0_i32_19 = arith.constant 0 : i32
    %54 = arith.cmpi eq, %arg0, %c0_i32_19 : i32
    %55 = arith.extui %54 : i1 to i32
    %c0_i32_20 = arith.constant 0 : i32
    %56 = arith.cmpi ne, %55, %c0_i32_20 : i32
    scf.if %56 {
      %c0_21 = arith.constant 0 : index
      %57 = memref.load %arg5[%c0_21] : memref<2xf32, #tpu.memory_space<smem>>
      %c1_22 = arith.constant 1 : index
      %58 = memref.load %arg5[%c1_22] : memref<2xf32, #tpu.memory_space<smem>>
      %59 = arith.divf %57, %58 : f32
      %c0_23 = arith.constant 0 : index
      %c0_24 = arith.constant 0 : index
      %60 = memref.load %arg4[%c0_23, %c0_24] : memref<1x1xf32, #tpu.memory_space<smem>>
      memref.store %59, %arg4[%c0_23, %c0_24] : memref<1x1xf32, #tpu.memory_space<smem>>
    } else {
    }
    return
  }
  func.func @transform_0(%arg0: i32) -> (i32, i32) {
    %c0_i32 = arith.constant 0 : i32
    %c0_i32_0 = arith.constant 0 : i32
    return %c0_i32, %arg0 : i32, i32
  }
  func.func @transform_1(%arg0: i32) -> (i32, i32) {
    %c0_i32 = arith.constant 0 : i32
    %c0_i32_0 = arith.constant 0 : i32
    return %c0_i32, %arg0 : i32, i32
  }
  func.func @transform_2(%arg0: i32) -> (i32, i32) {
    %c0_i32 = arith.constant 0 : i32
    %c0_i32_0 = arith.constant 0 : i32
    %c0_i32_1 = arith.constant 0 : i32
    return %c0_i32, %c0_i32_0 : i32, i32
  }
  func.func @transform_3(%arg0: i32) -> (i32, i32) {
    %c0_i32 = arith.constant 0 : i32
    %c0_i32_0 = arith.constant 0 : i32
    %c0_i32_1 = arith.constant 0 : i32
    return %c0_i32, %c0_i32_0 : i32, i32
  }
}

</mosaic_0001>

<llo_original>
// kernel: tpu_custom_call.1
$region0: #{tpu_custom_call.1}
  #allocation0 [shape = 'u32[]', space=smem, size = 0x4, offset = 0x4, fixed_abs, tag = 'smem constant byte address 0x4 - core index']
  #allocation1 [shape = 'u32[144,128]{1,0:T(1,128)}', space=vmem, size = 0x12000, scoped, tag = 'internal scratch']
  #allocation2 [shape = 'f32[2]{0:T(128)}', space=smem, size = 0x200, scoped, tag = 'scratch operand']
  %s0 = inlined_call_operand.vmem [shape: f32[4,8], index: 0, kind: input, shape index: {}]
  %s1 = inlined_call_operand.vmem [shape: s32[1,8], index: 1, kind: input, shape index: {}]
  %s2 = inlined_call_operand.vmem [shape: f32[4,1], index: 2, kind: input, shape index: {}]
  %s3 = inlined_call_operand.hbm [shape: f32[1,1], index: 3, kind: output, shape index: {}]
  %s4 = sld [smem:[#allocation0]]
  $region30: #{tpu_custom_call.1} parent=0
    _
  %s6 = ssub.s32 1, %s4
  %s7 = scalar_select 0, %s6, %s4
  $region1: #{tpu_custom_call.1} parent=0
    #allocation3 [shape = 'u8[512]{0}', space=smem, size = 0x200, scoped, tag = 'output window, operand 0, single buffered']
    #allocation4 [shape = 's32[1]{0}', space=sflag, size = 0x4, scoped, tag = 'scoped memory for tpu_custom_call.1']
    %8 = vsyncpa [#allocation4], 0
    // Predicated region
    $region2: #{tpu_custom_call.1} parent=1 // pred_check
      _
    $region3: #{tpu_custom_call.1} parent=1 // pred_check_branch
      %10 = sbr.rel (0) target = $region5
    $region4: #{tpu_custom_call.1} parent=1 // pred_region
      _
    $region5: #{tpu_custom_call.1} parent=1 // pred_fallthru
      _
    // Predicated region
    $region6: #{tpu_custom_call.1} parent=1 // pred_check
      _
    $region7: #{tpu_custom_call.1} parent=1 // pred_check_branch
      %12 = sbr.rel (0) target = $region9
    $region8: #{tpu_custom_call.1} parent=1 // pred_region
      _
    $region9: #{tpu_custom_call.1} parent=1 // pred_fallthru
      _
    // Predicated region
    $region10: #{tpu_custom_call.1} parent=1 // pred_check
      _
    $region11: #{tpu_custom_call.1} parent=1 // pred_check_branch
      %14 = sbr.rel (0) target = $region13
    $region12: #{tpu_custom_call.1} parent=1 // pred_region
      _
    $region13: #{tpu_custom_call.1} parent=1 // pred_fallthru
      _
    %p15 = scmp.eq.s32.totalorder 0, 0
    // Predicated region
    $region14: #{tpu_custom_call.1} parent=1 // pred_check
      %p16 = pneg %p15
    $region15: #{tpu_custom_call.1} parent=1 // pred_check_branch
      %18 = sbr.rel (%p16) target = $region17
    $region16: #{tpu_custom_call.1} parent=1 // pred_region
      %s19 = scalar_lea.smem [#allocation2], 0
      %20 = sst [smem:[%s19]] 0.0
      %s21 = scalar_lea.smem [#allocation2], 1
      %22 = sst [smem:[%s21]] 0.0
    $region17: #{tpu_custom_call.1} parent=1 // pred_fallthru
      _
    %v23 = vld [vmem:[%s0] sm:$0xf]
    %v24 = vld [vmem:[%s1] sm:$0x1]
    %v25 = vld [vmem:[%s2] sm:$0xf]
    %v26 = vlaneseq
    %v27 = vshrl.u32 %v26, 7
    %v28 = vlaneseq
    %v29 = vshrl.u32 %v28, 7
    %v30 = vsub.s32 0, %v29
    %v31 = vrot.slane %v24, %v30
    %vm32 = vcmp.eq.s32.totalorder %v27, %v31
    %vm33 = vcmask 60416
    %v34 = vsel %vm33, %v23, -inf
    %v35 = vrot.slane %v34, 4
    %v36 = vmax.f32 %v34, %v35
    %v37 = vrot.slane %v36, 2
    %v38 = vmax.f32 %v36, %v37
    %v39 = vrot.slane %v38, 1
    %v40 = vmax.f32 %v38, %v39
    %v41 = vsub.f32 %v23, %v40
    %v42 = vmul.f32 %v41, 1.442695
    %v43 = vpow.pop %v42
    %v44 = vsel %vm33, %v43, 0.0
    %v45 = vrot.slane %v44, 4
    %v46 = vadd.f32 %v44, %v45
    %v47 = vrot.slane %v46, 2
    %v48 = vadd.f32 %v46, %v47
    %v49 = vrot.slane %v48, 1
    %v50 = vadd.f32 %v48, %v49
    %v51 = vlog2.pop %v50
    %v52 = vmul.f32 %v51, 0.6931472
    %v53 = vadd.f32 %v40, %v52
    %v54 = vsel %vm32, %v23, 0.0
    %v55 = vsel %vm33, %v54, 0.0
    %v56 = vrot.slane %v55, 4
    %v57 = vadd.f32 %v55, %v56
    %v58 = vrot.slane %v57, 2
    %v59 = vadd.f32 %v57, %v58
    %v60 = vrot.slane %v59, 1
    %v61 = vadd.f32 %v59, %v60
    %63 = vset.pattern.permute.xlu0 0
    %64 = vperm.xlu0 %63, %v25
    %v65 = vpop.permute.xlu0 %64
    %v67 = vsel %vm32, %v65, 0.0
    %v68 = vsel %vm33, %v67, 0.0
    %v69 = vrot.slane %v68, 4
    %v70 = vadd.f32 %v68, %v69
    %v71 = vrot.slane %v70, 2
    %v72 = vadd.f32 %v70, %v71
    %v73 = vrot.slane %v72, 1
    %v74 = vadd.f32 %v72, %v73
    %v75 = vlaneseq
    %v76 = vand.u32 %v75, 127
    %s77 = smul.u32 0, 8
    %v78 = vstv %s77
    %v79 = vadd.s32 %v76, %v78
    %vm80 = vcmp.lt.s32.totalorder %v79, 8
    %v81 = vsub.f32 %v53, %v61
    %s82 = sld [smem:[#allocation2]]
    %v83 = vmul.f32 %v74, %v81
    %v84 = vsel %vm80, %v83, 0.0
    %vm85 = vcmask 57344
    %v86 = vsel %vm85, %v84, 0.0
    %87 = vadd.xlane.f32.xlu0 %v86
    %v88 = vpop.xlane.xlu0 %87
    %v89 = vrot.slane %v88, 4
    %v90 = vadd.f32 %v88, %v89
    %v91 = vrot.slane %v90, 2
    %v92 = vadd.f32 %v90, %v91
    %v93 = vrot.slane %v92, 1
    %v94 = vadd.f32 %v92, %v93
    %s95 = vtos %v94
    %s96 = sadd.f32 %s82, %s95
    %s97 = scalar_lea.smem [#allocation2], 0
    %98 = sst [smem:[%s97]] %s96
    %s99 = sld [smem:[#allocation2 + $0x1]]
    %v100 = vsel %vm80, %v74, 0.0
    %v101 = vsel %vm85, %v100, 0.0
    %102 = vadd.xlane.f32.xlu0 %v101
    %v103 = vpop.xlane.xlu0 %102
    %v104 = vrot.slane %v103, 4
    %v105 = vadd.f32 %v103, %v104
    %v106 = vrot.slane %v105, 2
    %v107 = vadd.f32 %v105, %v106
    %v108 = vrot.slane %v107, 1
    %v109 = vadd.f32 %v107, %v108
    %s110 = vtos %v109
    %s111 = sadd.f32 %s99, %s110
    %s112 = scalar_lea.smem [#allocation2], 1
    %113 = sst [smem:[%s112]] %s111
    // Predicated region
    $region18: #{tpu_custom_call.1} parent=1 // pred_check
      %p114 = pneg %p15
    $region19: #{tpu_custom_call.1} parent=1 // pred_check_branch
      %116 = sbr.rel (%p114) target = $region21
    $region20: #{tpu_custom_call.1} parent=1 // pred_region
      %s117 = sld [smem:[#allocation2]]
      %s118 = sld [smem:[#allocation2 + $0x1]]
      %v119 = vstv %s118
      %v120 = vrcp.pop %v119
      %s121 = vtos %v120
      %s122 = smul.f32 %s117, %s121
      %s123 = scalar_lea.smem [#allocation3], 0
      %124 = sst [smem:[%s123]] %s122
    $region21: #{tpu_custom_call.1} parent=1 // pred_fallthru
      _
    // Predicated region
    $region22: #{tpu_custom_call.1} parent=1 // pred_check
      _
    $region23: #{tpu_custom_call.1} parent=1 // pred_check_branch
      %126 = sbr.rel (0) target = $region25
    $region24: #{tpu_custom_call.1} parent=1 // pred_region
      %s128 = ssub.s32 16, 16
      %129 = vsyncadd [#allocation4], %s128
      %132 = dma.smem_to_hbm [#allocation3], 16, %s3, [#allocation4]
    $region25: #{tpu_custom_call.1} parent=1 // pred_fallthru
      _
    // Predicated region
    $region26: #{tpu_custom_call.1} parent=1 // pred_check
      _
    $region27: #{tpu_custom_call.1} parent=1 // pred_check_branch
      %134 = sbr.rel (0) target = $region29
    $region28: #{tpu_custom_call.1} parent=1 // pred_region
      %135 = dma.done [#allocation4], 16
    $region29: #{tpu_custom_call.1} parent=1 // pred_fallthru
      _
    %136 = sfence
    %137 = vsyncpa [#allocation4], 1

</llo_original>
